<compile_context>
chip_gen: v5e
topology: v5e:2x2
jax: 0.10.0
libtpu: 0.0.40
codegen_flags: <defaults>
</compile_context>

<pallas_src>
import functools

import jax
import jax.numpy as jnp
from jax.experimental import pallas as pl
from jax.experimental.pallas import tpu as pltpu


_TILE_B = 256          # batch tile for the gridded large-batch path
_GRID_THRESHOLD = 256  # use the batch grid only when B > this


def _round_up(x, m):
    return ((x + m - 1) // m) * m


def _mlp_kernel(x_ref, w_ref, b_ref, o_ref, *, d_in_p, width):
    """Fused 3-layer MLP.

    x_ref : (B, d_in_p)  f32 state block (zero-padded columns).
    w_ref : (d_in_p + 2*width, width) bf16 row-stacked slab of the three
            (in, out) weight blocks; w2/w3 rows zero-padded up to `width` so
            no intermediate lane slicing is needed.
    b_ref : (3, width) f32 slab of the three biases (zero-padded).
    o_ref : (B, width) f32 lane-dense output; caller slices to n_actions.
    """
    x = x_ref[...].astype(jnp.bfloat16)                       # (B, d_in_p) bf16

    # Static, 16-sublane-aligned row slices of the packed bf16 weight slab.
    w1 = w_ref[0:d_in_p, :]                                   # (d_in_p, width)
    w2 = w_ref[d_in_p:d_in_p + width, :]                      # (width,  width)
    w3 = w_ref[d_in_p + width:d_in_p + 2 * width, :]          # (width,  width)

    b1 = b_ref[0:1, :]
    b2 = b_ref[1:2, :]
    b3 = b_ref[2:3, :]

    # bf16 x bf16 -> f32 accumulation on the MXU; padded lanes stay exactly 0
    # (zero weight columns/rows + zero bias + ReLU), so no slicing is needed
    # between layers.
    h = jnp.maximum(jnp.dot(x, w1, preferred_element_type=jnp.float32) + b1, 0.0)
    h = jnp.maximum(
        jnp.dot(h.astype(jnp.bfloat16), w2, preferred_element_type=jnp.float32) + b2,
        0.0,
    )
    q = jnp.dot(h.astype(jnp.bfloat16), w3, preferred_element_type=jnp.float32) + b3
    o_ref[...] = q                                            # lane-dense store


def prepare_params(params, *, weight_dtype=jnp.bfloat16):
    """One-time layout prep (NOT in the forward hot path).

    * transposes each PyTorch-style (out, in) weight to (in, out)
    * zero-pads: output width -> multiple of 128 lanes; first block rows
      (d_in) -> multiple of 16 (bf16 sublane pack); w2/w3 rows -> `width`
    * row-stacks the three blocks into one bf16 slab  -> one DMA
    * packs the three biases into one (3, width) f32 slab -> one DMA
    """
    (w1, b1), (w2, b2), (w3, b3) = params
    d_in, h1 = w1.shape[1], w1.shape[0]
    h2, n_actions = w2.shape[0], w3.shape[0]
    width = _round_up(max(h1, h2, n_actions), 128)
    d_in_p = _round_up(d_in, 16)

    def pad_block(wt, rows):
        return jnp.pad(wt, ((0, rows - wt.shape[0]), (0, width - wt.shape[1])))

    w_slab = jnp.concatenate(
        [pad_block(w1.T, d_in_p), pad_block(w2.T, width), pad_block(w3.T, width)],
        axis=0,
    ).astype(weight_dtype)                                # (d_in_p + 2*width, width)

    def pad_bias(b):
        return jnp.pad(b, (0, width - b.shape[0]))

    b_slab = jnp.stack(
        [pad_bias(b1), pad_bias(b2), pad_bias(b3)]
    ).astype(jnp.float32)                                 # (3, width)

    dims = dict(d_in=d_in, d_in_p=d_in_p, h1=h1, h2=h2,
                n_actions=n_actions, width=width)
    return dict(w_slab=w_slab, b_slab=b_slab, dims=dims)


def _forward_impl(x_pad, prepared):
    """x_pad: (B, d_in_p) f32.  Returns the lane-dense (B, width) Q block."""
    dims = prepared["dims"]
    d_in_p, width = dims["d_in_p"], dims["width"]
    w_slab, b_slab = prepared["w_slab"], prepared["b_slab"]
    B = x_pad.shape[0]

    kernel = functools.partial(_mlp_kernel, d_in_p=d_in_p, width=width)

    if B <= _GRID_THRESHOLD:
        # Gridless: everything fits in VMEM; pipeline-step overhead would
        # exceed the whole compute at these sizes.
        vmem = pl.BlockSpec(memory_space=pltpu.MemorySpace.VMEM)
        return pl.pallas_call(
            kernel,
            out_shape=jax.ShapeDtypeStruct((B, width), jnp.float32),
            in_specs=[vmem, vmem, vmem],
            out_specs=vmem,
        )(x_pad, w_slab, b_slab)

    # Large-batch path: parallel batch grid (megacore split on v7x, fills the
    # MXU M dimension); weight/bias slabs stay VMEM-resident across blocks.
    nb = pl.cdiv(B, _TILE_B)
    b_padded = nb * _TILE_B
    if b_padded != B:
        x_pad = jnp.pad(x_pad, ((0, b_padded - B), (0, 0)))
    out = pl.pallas_call(
        kernel,
        out_shape=jax.ShapeDtypeStruct((b_padded, width), jnp.float32),
        grid=(nb,),
        in_specs=[
            pl.BlockSpec((_TILE_B, d_in_p), lambda i: (i, 0)),
            pl.BlockSpec(w_slab.shape, lambda i: (0, 0)),
            pl.BlockSpec(b_slab.shape, lambda i: (0, 0)),
        ],
        out_specs=pl.BlockSpec((_TILE_B, width), lambda i: (i, 0)),
        compiler_params=pltpu.CompilerParams(dimension_semantics=("parallel",)),
    )(x_pad, w_slab, b_slab)
    return out[:B]


def _pad_state_cols(x, dims):
    d_in, d_in_p = dims["d_in"], dims["d_in_p"]
    if d_in_p != d_in:
        x = jnp.pad(x, ((0, 0), (0, d_in_p - d_in)))
    return x


def build_model_forward(state, prepared):
    """Mirrors BuildModel.forward: reshape to [1, input_dim], run the layers."""
    dims = prepared["dims"]
    x = jnp.reshape(state, (1, dims["d_in"])).astype(jnp.float32)
    q = _forward_impl(_pad_state_cols(x, dims), prepared)
    return q[:, : dims["n_actions"]]


def build_model_forward_batch(states, prepared):
    """Throughput path: (B, input_dim) batch of states -> (B, n_actions)."""
    dims = prepared["dims"]
    x = jnp.asarray(states, jnp.float32).reshape(-1, dims["d_in"])
    q = _forward_impl(_pad_state_cols(x, dims), prepared)
    return q[:, : dims["n_actions"]]


def init_params(key, input_dim, hidden, n_actions):
    """Deterministic PyTorch-style (out, in) weights, uniform(-k, k) init."""
    def linear_init(k, fan_in, fan_out):
        kw, kb = jax.random.split(k)
        bound = 1.0 / jnp.sqrt(fan_in)
        w = jax.random.uniform(kw, (fan_out, fan_in), jnp.float32, -bound, bound)
        b = jax.random.uniform(kb, (fan_out,), jnp.float32, -bound, bound)
        return w, b

    k1, k2, k3 = jax.random.split(key, 3)
    return (
        linear_init(k1, input_dim, hidden),
        linear_init(k2, hidden, hidden),
        linear_init(k3, hidden, n_actions),
    )


def _reference_forward(x, params):
    """Pure-JAX reference emulating the kernel math (bf16 operands, f32 acc)."""
    (w1, b1), (w2, b2), (w3, b3) = params
    bf = lambda a: a.astype(jnp.bfloat16).astype(jnp.float32)
    hp = jax.lax.Precision.HIGHEST
    h = jnp.maximum(jnp.dot(bf(x), bf(w1).T, precision=hp) + b1, 0.0)
    h = jnp.maximum(jnp.dot(bf(h), bf(w2).T, precision=hp) + b2, 0.0)
    return jnp.dot(bf(h), bf(w3).T, precision=hp) + b3


if __name__ == "__main__":
    input_dimension = 16
    hidden = 32
    n_actions = 4
    batch = 8
    big_batch = 600   # exercises the gridded parallel-batch path

    key = jax.random.PRNGKey(0)
    k_params, k_state, k_batch, k_big = jax.random.split(key, 4)

    params = init_params(k_params, input_dimension, hidden, n_actions)
    prepared = prepare_params(params)   # one-time layout prep, out of hot path

    # --- module-semantics path: one flat state, reshaped to [1, input_dim] ---
    state = jax.random.normal(k_state, (input_dimension,), jnp.float32)
    q_values = jax.block_until_ready(build_model_forward(state, prepared))
    ref = _reference_forward(jnp.reshape(state, (1, input_dimension)), params)
    assert q_values.shape == (1, n_actions)
    assert jnp.allclose(q_values, ref, atol=2e-3, rtol=2e-3)

    # --- small batched path (gridless) ---
    states = jax.random.normal(k_batch, (batch, input_dimension), jnp.float32)
    q_batch = jax.block_until_ready(build_model_forward_batch(states, prepared))
    ref_batch = _reference_forward(states, params)
    assert q_batch.shape == (batch, n_actions)
    assert jnp.allclose(q_batch, ref_batch, atol=2e-3, rtol=2e-3)

    # --- large batched path (parallel batch grid, TILE_B=256) ---
    big_states = jax.random.normal(k_big, (big_batch, input_dimension), jnp.float32)
    q_big = jax.block_until_ready(build_model_forward_batch(big_states, prepared))
    ref_big = _reference_forward(big_states, params)
    assert q_big.shape == (big_batch, n_actions)
    assert jnp.allclose(q_big, ref_big, atol=2e-3, rtol=2e-3)

    print("KERNEL_OK")
</pallas_src>

<mosaic_0001>
module attributes {stable_mosaic.version = 11 : i64} {
  func.func @_mlp_kernel(%arg0: memref<1x16xf32, #tpu.memory_space<vmem>>, %arg1: memref<272x128xbf16, #tpu.memory_space<vmem>>, %arg2: memref<3x128xf32, #tpu.memory_space<vmem>>, %arg3: memref<1x128xf32, #tpu.memory_space<vmem>>) attributes {dimension_semantics = [], scalar_prefetch = 0 : i64, scratch_operands = 0 : i64, tpu.core_type = #tpu.core_type<tc>} {
    %c0 = arith.constant 0 : index
    %c0_0 = arith.constant 0 : index
    %0 = vector.load %arg0[%c0, %c0_0] : memref<1x16xf32, #tpu.memory_space<vmem>>, vector<1x16xf32>
    %1 = arith.truncf %0 : vector<1x16xf32> to vector<1x16xbf16>
    %c0_1 = arith.constant 0 : index
    %c0_2 = arith.constant 0 : index
    %2 = vector.load %arg1[%c0_1, %c0_2] : memref<272x128xbf16, #tpu.memory_space<vmem>>, vector<16x128xbf16>
    %c16 = arith.constant 16 : index
    %c0_3 = arith.constant 0 : index
    %3 = vector.load %arg1[%c16, %c0_3] : memref<272x128xbf16, #tpu.memory_space<vmem>>, vector<128x128xbf16>
    %c144 = arith.constant 144 : index
    %c0_4 = arith.constant 0 : index
    %4 = vector.load %arg1[%c144, %c0_4] : memref<272x128xbf16, #tpu.memory_space<vmem>>, vector<128x128xbf16>
    %c0_5 = arith.constant 0 : index
    %c0_6 = arith.constant 0 : index
    %5 = vector.load %arg2[%c0_5, %c0_6] : memref<3x128xf32, #tpu.memory_space<vmem>>, vector<1x128xf32>
    %c1 = arith.constant 1 : index
    %c0_7 = arith.constant 0 : index
    %6 = vector.load %arg2[%c1, %c0_7] : memref<3x128xf32, #tpu.memory_space<vmem>>, vector<1x128xf32>
    %c2 = arith.constant 2 : index
    %c0_8 = arith.constant 0 : index
    %7 = vector.load %arg2[%c2, %c0_8] : memref<3x128xf32, #tpu.memory_space<vmem>>, vector<1x128xf32>
    %cst = arith.constant dense<0.000000e+00> : vector<1x128xf32>
    %8 = tpu.matmul %1, %2, %cst {dimension_numbers = #tpu.dot_dimension_numbers<[1], [0], [0], [1], [0, 0, 1, 1], [], []>} : vector<1x16xbf16>, vector<16x128xbf16>, vector<1x128xf32> -> vector<1x128xf32>
    %9 = arith.addf %8, %5 : vector<1x128xf32>
    %cst_9 = arith.constant 0.000000e+00 : f32
    %10 = vector.broadcast %cst_9 : f32 to vector<1x128xf32>
    %11 = arith.maximumf %9, %10 : vector<1x128xf32>
    %12 = arith.truncf %11 : vector<1x128xf32> to vector<1x128xbf16>
    %cst_10 = arith.constant dense<0.000000e+00> : vector<1x128xf32>
    %13 = tpu.matmul %12, %3, %cst_10 {dimension_numbers = #tpu.dot_dimension_numbers<[1], [0], [0], [1], [0, 0, 1, 1], [], []>} : vector<1x128xbf16>, vector<128x128xbf16>, vector<1x128xf32> -> vector<1x128xf32>
    %14 = arith.addf %13, %6 : vector<1x128xf32>
    %cst_11 = arith.constant 0.000000e+00 : f32
    %15 = vector.broadcast %cst_11 : f32 to vector<1x128xf32>
    %16 = arith.maximumf %14, %15 : vector<1x128xf32>
    %17 = arith.truncf %16 : vector<1x128xf32> to vector<1x128xbf16>
    %cst_12 = arith.constant dense<0.000000e+00> : vector<1x128xf32>
    %18 = tpu.matmul %17, %4, %cst_12 {dimension_numbers = #tpu.dot_dimension_numbers<[1], [0], [0], [1], [0, 0, 1, 1], [], []>} : vector<1x128xbf16>, vector<128x128xbf16>, vector<1x128xf32> -> vector<1x128xf32>
    %19 = arith.addf %18, %7 : vector<1x128xf32>
    %c0_13 = arith.constant 0 : index
    %c0_14 = arith.constant 0 : index
    %20 = vector.load %arg3[%c0_13, %c0_14] : memref<1x128xf32, #tpu.memory_space<vmem>>, vector<1x128xf32>
    tpu.vector_store %arg3[%c0_13, %c0_14], %19 {strides = array<i32>} : memref<1x128xf32, #tpu.memory_space<vmem>>, vector<1x128xf32>,
    return
  }
}

</mosaic_0001>

<llo_original>
// kernel: tpu_custom_call.1
$region0: #{tpu_custom_call.1}
  #allocation0 [shape = 'u32[]', space=smem, size = 0x4, offset = 0x4, fixed_abs, tag = 'smem constant byte address 0x4 - core index']
  #allocation1 [shape = 'u32[72,128]{1,0:T(1,128)}', space=vmem, size = 0x9000, scoped, tag = 'internal scratch']
  %s0 = inlined_call_operand.hbm [shape: f32[1,16], index: 0, kind: input, shape index: {}]
  %s1 = inlined_call_operand.hbm [shape: bf16[272,128], index: 1, kind: input, shape index: {}]
  %s2 = inlined_call_operand.hbm [shape: f32[3,128], index: 2, kind: input, shape index: {}]
  %s3 = inlined_call_operand.hbm [shape: f32[1,128], index: 3, kind: output, shape index: {}]
  %s4 = sld [smem:[#allocation0]]
  $region34: #{tpu_custom_call.1} parent=0
    _
  %s6 = ssub.s32 1, %s4
  %s7 = scalar_select 0, %s6, %s4
  $region1: #{tpu_custom_call.1} parent=0
    #allocation2 [shape = 'u8[512]{0}', space=vmem, size = 0x400, scoped, tag = 'input window, operand 0, single buffered']
    #allocation3 [shape = 's32[1]{0}', space=sflag, size = 0x4, scoped, tag = 'scoped memory for tpu_custom_call.1']
    #allocation4 [shape = 's32[1]{0}', space=sflag, size = 0x4, scoped, tag = 'scoped memory for tpu_custom_call.1']
    #allocation5 [shape = 'u8[69632]{0}', space=vmem, size = 0x11000, scoped, tag = 'input window, operand 1, single buffered']
    #allocation6 [shape = 's32[1]{0}', space=sflag, size = 0x4, scoped, tag = 'scoped memory for tpu_custom_call.1']
    #allocation7 [shape = 'u8[2048]{0}', space=vmem, size = 0x800, scoped, tag = 'input window, operand 2, single buffered']
    #allocation8 [shape = 'u8[512]{0}', space=vmem, size = 0x400, scoped, tag = 'output window, operand 0, single buffered']
    %8 = vsyncpa [#allocation3], 0
    %9 = vsyncpa [#allocation6], 0
    %10 = vsyncpa [#allocation4], 0
    // Predicated region
    $region2: #{tpu_custom_call.1} parent=1 // pred_check
      _
    $region3: #{tpu_custom_call.1} parent=1 // pred_check_branch
      %12 = sbr.rel (0) target = $region5
    $region4: #{tpu_custom_call.1} parent=1 // pred_region
      %14 = vsyncadd [#allocation3], 0
      %s16 = sshll.u32 %s0, 4
      %s17 = int_to_ptr.hbm [resolvable:$true] %s16
      %s18 = sshll.u32 [#allocation2], 4
      %s19 = int_to_ptr.vmem [resolvable:$true] %s18
      %21 = dma.hbm_to_vmem [thread:$0]  %s17, 16, %s19, [#allocation3]
    $region5: #{tpu_custom_call.1} parent=1 // pred_fallthru
      _
    // Predicated region
    $region6: #{tpu_custom_call.1} parent=1 // pred_check
      _
    $region7: #{tpu_custom_call.1} parent=1 // pred_check_branch
      %23 = sbr.rel (0) target = $region9
    $region8: #{tpu_custom_call.1} parent=1 // pred_region
      %25 = vsyncadd [#allocation6], 0
      %s26 = sshll.u32 %s1, 4
      %s27 = int_to_ptr.hbm [resolvable:$true] %s26
      %s28 = sshll.u32 [#allocation5], 4
      %s29 = int_to_ptr.vmem [resolvable:$true] %s28
      %34 = dma.hbm_to_vmem [thread:$0]  %s27, 2176, %s29, [#allocation6], 64, 64, 4
    $region9: #{tpu_custom_call.1} parent=1 // pred_fallthru
      _
    // Predicated region
    $region10: #{tpu_custom_call.1} parent=1 // pred_check
      _
    $region11: #{tpu_custom_call.1} parent=1 // pred_check_branch
      %36 = sbr.rel (0) target = $region13
    $region12: #{tpu_custom_call.1} parent=1 // pred_region
      %38 = vsyncadd [#allocation6], 0
      %s40 = sshll.u32 %s2, 4
      %s41 = int_to_ptr.hbm [resolvable:$true] %s40
      %s42 = sshll.u32 [#allocation7], 4
      %s43 = int_to_ptr.vmem [resolvable:$true] %s42
      %45 = dma.hbm_to_vmem [thread:$0]  %s41, 64, %s43, [#allocation6]
    $region13: #{tpu_custom_call.1} parent=1 // pred_fallthru
      _
    // Predicated region
    $region14: #{tpu_custom_call.1} parent=1 // pred_check
      _
    $region15: #{tpu_custom_call.1} parent=1 // pred_check_branch
      %47 = sbr.rel (0) target = $region17
    $region16: #{tpu_custom_call.1} parent=1 // pred_region
      %49 = dma.done [#allocation3], 16
    $region17: #{tpu_custom_call.1} parent=1 // pred_fallthru
      _
    // Predicated region
    $region18: #{tpu_custom_call.1} parent=1 // pred_check
      _
    $region19: #{tpu_custom_call.1} parent=1 // pred_check_branch
      %51 = sbr.rel (0) target = $region21
    $region20: #{tpu_custom_call.1} parent=1 // pred_region
      %53 = dma.done [#allocation6], 2176
    $region21: #{tpu_custom_call.1} parent=1 // pred_fallthru
      _
    // Predicated region
    $region22: #{tpu_custom_call.1} parent=1 // pred_check
      _
    $region23: #{tpu_custom_call.1} parent=1 // pred_check_branch
      %55 = sbr.rel (0) target = $region25
    $region24: #{tpu_custom_call.1} parent=1 // pred_region
      %57 = dma.done [#allocation6], 64
    $region25: #{tpu_custom_call.1} parent=1 // pred_fallthru
      _
    %v59 = vld [vmem:[#allocation2] sm:$0x1]
    %v60 = vpack.c.bf16 %v59, %v59
    %v61 = vld [vmem:[#allocation5] sm:$0xf]
    %v62 = vld [vmem:[#allocation5 + $0x4] sm:$0xf]
    %v63 = vld [vmem:[#allocation5 + $0x8] sm:$0xf]
    %v64 = vld [vmem:[#allocation5 + $0xc] sm:$0xf]
    %v65 = vld [vmem:[#allocation5 + $0x10] sm:$0xf]
    %v66 = vld [vmem:[#allocation5 + $0x14] sm:$0xf]
    %v67 = vld [vmem:[#allocation5 + $0x18] sm:$0xf]
    %v68 = vld [vmem:[#allocation5 + $0x1c] sm:$0xf]
    %v69 = vld [vmem:[#allocation5 + $0x20] sm:$0xf]
    %v70 = vld [vmem:[#allocation5 + $0x24] sm:$0xf]
    %v71 = vld [vmem:[#allocation5 + $0x28] sm:$0xf]
    %v72 = vld [vmem:[#allocation5 + $0x2c] sm:$0xf]
    %v73 = vld [vmem:[#allocation5 + $0x30] sm:$0xf]
    %v74 = vld [vmem:[#allocation5 + $0x34] sm:$0xf]
    %v75 = vld [vmem:[#allocation5 + $0x38] sm:$0xf]
    %v76 = vld [vmem:[#allocation5 + $0x3c] sm:$0xf]
    %v77 = vld [vmem:[#allocation5 + $0x40] sm:$0xf]
    %v78 = vld [vmem:[#allocation5 + $0x44] sm:$0xf]
    %v79 = vld [vmem:[#allocation5 + $0x48] sm:$0xf]
    %v80 = vld [vmem:[#allocation5 + $0x4c] sm:$0xf]
    %v81 = vld [vmem:[#allocation5 + $0x50] sm:$0xf]
    %v82 = vld [vmem:[#allocation5 + $0x54] sm:$0xf]
    %v83 = vld [vmem:[#allocation5 + $0x58] sm:$0xf]
    %v84 = vld [vmem:[#allocation5 + $0x5c] sm:$0xf]
    %v85 = vld [vmem:[#allocation5 + $0x60] sm:$0xf]
    %v86 = vld [vmem:[#allocation5 + $0x64] sm:$0xf]
    %v87 = vld [vmem:[#allocation5 + $0x68] sm:$0xf]
    %v88 = vld [vmem:[#allocation5 + $0x6c] sm:$0xf]
    %v89 = vld [vmem:[#allocation5 + $0x70] sm:$0xf]
    %v90 = vld [vmem:[#allocation5 + $0x74] sm:$0xf]
    %v91 = vld [vmem:[#allocation5 + $0x78] sm:$0xf]
    %v92 = vld [vmem:[#allocation5 + $0x7c] sm:$0xf]
    %v93 = vld [vmem:[#allocation5 + $0x80] sm:$0xf]
    %v94 = vld [vmem:[#allocation5 + $0x84] sm:$0xf]
    %v95 = vld [vmem:[#allocation7] sm:$0x1]
    %v96 = vld [vmem:[#allocation7 + $0x1] sm:$0x1]
    %v97 = vld [vmem:[#allocation7 + $0x2] sm:$0x1]
    %v100 = vunpack.c.l.b16 %v61
    %v101 = vunpack.c.l.b16 %v62
    %v102 = vpack.c.b16 %v101, %v100
    %vm104 = vcmask 130048
    %v106 = vsel %vm104, %v60, 0
    %108 = vmatpush.bf16.msra.mxu0 0
    %109 = vmatpush.bf16.msra.mxu0 0
    %110 = vmatpush.bf16.msra.mxu0 0
    %111 = vmatpush.bf16.msra.mxu0 0
    %112 = vmatpush.bf16.msra.mxu0 0
    %113 = vmatpush.bf16.msra.mxu0 0
    %114 = vmatpush.bf16.msra.mxu0 0
    %115 = vmatpush.bf16.msra.mxu0 %v102
    %116 = vmatmul.bf16.gmra.mxu0 %v106
    %v117 = vpop.f32.mrf.mxu0
    %v118 = vadd.f32 %v95, %v117
    %v119 = vpop.f32.mrf.mxu0
    %120 = vdwg.mxu0
    %v121 = vmax.f32 %v118, 0.0
    %v122 = vpack.c.bf16 %v121, %v121
    %v139 = vunpack.c.l.b16 %v63
    %v140 = vunpack.c.l.b16 %v64
    %v141 = vunpack.c.l.b16 %v65
    %v142 = vunpack.c.l.b16 %v66
    %v143 = vunpack.c.l.b16 %v67
    %v144 = vunpack.c.l.b16 %v68
    %v145 = vunpack.c.l.b16 %v69
    %v146 = vunpack.c.l.b16 %v70
    %v147 = vunpack.c.l.b16 %v71
    %v148 = vunpack.c.l.b16 %v72
    %v149 = vunpack.c.l.b16 %v73
    %v150 = vunpack.c.l.b16 %v74
    %v151 = vunpack.c.l.b16 %v75
    %v152 = vunpack.c.l.b16 %v76
    %v153 = vunpack.c.l.b16 %v77
    %v154 = vunpack.c.l.b16 %v78
    %v155 = vpack.c.b16 %v140, %v139
    %v156 = vpack.c.b16 %v142, %v141
    %v157 = vpack.c.b16 %v144, %v143
    %v158 = vpack.c.b16 %v146, %v145
    %v159 = vpack.c.b16 %v148, %v147
    %v160 = vpack.c.b16 %v150, %v149
    %v161 = vpack.c.b16 %v152, %v151
    %v162 = vpack.c.b16 %v154, %v153
    %171 = vmatpush.bf16.msra.mxu0 %v162
    %172 = vmatpush.bf16.msra.mxu0 %v161
    %173 = vmatpush.bf16.msra.mxu0 %v160
    %174 = vmatpush.bf16.msra.mxu0 %v159
    %175 = vmatpush.bf16.msra.mxu0 %v158
    %176 = vmatpush.bf16.msra.mxu0 %v157
    %177 = vmatpush.bf16.msra.mxu0 %v156
    %178 = vmatpush.bf16.msra.mxu0 %v155
    %179 = vmatmul.bf16.gmra.mxu0 %v122
    %v180 = vpop.f32.mrf.mxu0
    %v181 = vadd.f32 %v96, %v180
    %v182 = vpop.f32.mrf.mxu0
    %183 = vdwg.mxu0
    %v184 = vmax.f32 %v181, 0.0
    %v185 = vpack.c.bf16 %v184, %v184
    %v202 = vunpack.c.l.b16 %v79
    %v203 = vunpack.c.l.b16 %v80
    %v204 = vunpack.c.l.b16 %v81
    %v205 = vunpack.c.l.b16 %v82
    %v206 = vunpack.c.l.b16 %v83
    %v207 = vunpack.c.l.b16 %v84
    %v208 = vunpack.c.l.b16 %v85
    %v209 = vunpack.c.l.b16 %v86
    %v210 = vunpack.c.l.b16 %v87
    %v211 = vunpack.c.l.b16 %v88
    %v212 = vunpack.c.l.b16 %v89
    %v213 = vunpack.c.l.b16 %v90
    %v214 = vunpack.c.l.b16 %v91
    %v215 = vunpack.c.l.b16 %v92
    %v216 = vunpack.c.l.b16 %v93
    %v217 = vunpack.c.l.b16 %v94
    %v218 = vpack.c.b16 %v203, %v202
    %v219 = vpack.c.b16 %v205, %v204
    %v220 = vpack.c.b16 %v207, %v206
    %v221 = vpack.c.b16 %v209, %v208
    %v222 = vpack.c.b16 %v211, %v210
    %v223 = vpack.c.b16 %v213, %v212
    %v224 = vpack.c.b16 %v215, %v214
    %v225 = vpack.c.b16 %v217, %v216
    %234 = vmatpush.bf16.msra.mxu0 %v225
    %235 = vmatpush.bf16.msra.mxu0 %v224
    %236 = vmatpush.bf16.msra.mxu0 %v223
    %237 = vmatpush.bf16.msra.mxu0 %v222
    %238 = vmatpush.bf16.msra.mxu0 %v221
    %239 = vmatpush.bf16.msra.mxu0 %v220
    %240 = vmatpush.bf16.msra.mxu0 %v219
    %241 = vmatpush.bf16.msra.mxu0 %v218
    %242 = vmatmul.bf16.gmra.mxu0 %v185
    %v243 = vpop.f32.mrf.mxu0
    %v244 = vadd.f32 %v97, %v243
    %v245 = vpop.f32.mrf.mxu0
    %246 = vdwg.mxu0
    %247 = vst [vmem:[#allocation8] sm:$0x1] %v244
    // Predicated region
    $region26: #{tpu_custom_call.1} parent=1 // pred_check
      _
    $region27: #{tpu_custom_call.1} parent=1 // pred_check_branch
      %249 = sbr.rel (0) target = $region29
    $region28: #{tpu_custom_call.1} parent=1 // pred_region
      %251 = vsyncadd [#allocation4], 0
      %s253 = sshll.u32 [#allocation8], 4
      %s254 = int_to_ptr.vmem [resolvable:$true] %s253
      %s255 = sshll.u32 %s3, 4
      %s256 = int_to_ptr.hbm [resolvable:$true] %s255
      %258 = dma.vmem_to_hbm [thread:$0]  %s254, 16, %s256, [#allocation4]
    $region29: #{tpu_custom_call.1} parent=1 // pred_fallthru
      _
    // Predicated region
    $region30: #{tpu_custom_call.1} parent=1 // pred_check
      _
    $region31: #{tpu_custom_call.1} parent=1 // pred_check_branch
      %260 = sbr.rel (0) target = $region33
    $region32: #{tpu_custom_call.1} parent=1 // pred_region
      %262 = dma.done [#allocation4], 16
    $region33: #{tpu_custom_call.1} parent=1 // pred_fallthru
      _
    %263 = vsyncpa [#allocation3], 1
    %264 = vsyncpa [#allocation6], 1
    %265 = vsyncpa [#allocation4], 1

</llo_original>
